<compile_context>
chip_gen: v7x
topology: tpu7x:2x2x1
jax: 0.10.0
libtpu: 0.0.40
codegen_flags: <defaults>
</compile_context>

<pallas_src>
import jax
import jax.numpy as jnp
from jax.experimental import pallas as pl
from jax.experimental.pallas import tpu as pltpu

BN_EPS = 1e-5


def bilinear_matrix(in_size: int, scale: int) -> jnp.ndarray:
    """Dense (in_size*scale, in_size) interpolation matrix matching
    nn.Upsample(scale_factor=scale, mode='bilinear', align_corners=False)."""
    out_size = in_size * scale
    dst = jnp.arange(out_size, dtype=jnp.float32)
    src = (dst + 0.5) / scale - 0.5
    src = jnp.maximum(src, 0.0)
    i0 = jnp.minimum(jnp.floor(src).astype(jnp.int32), in_size - 1)
    i1 = jnp.minimum(i0 + 1, in_size - 1)
    frac = src - i0.astype(jnp.float32)
    rows = jnp.arange(out_size)
    a = jnp.zeros((out_size, in_size), jnp.float32)
    a = a.at[rows, i0].add(1.0 - frac)
    a = a.at[rows, i1].add(frac)
    return a


def setr_naive_forward(x, params, *, patch_dim, img_dim, num_classes):
    """x: (B, N, C) tokens, N = (img_dim/patch_dim)^2. Returns NCHW output."""
    w1, b1, gamma, beta, w2, b2 = params
    del b1  # exactly cancelled by training-mode BN mean subtraction (see note)
    B, N, C = x.shape
    H = W = img_dim // patch_dim
    assert N == H * W
    K = num_classes
    HW = H * W
    M = B * HW
    Ho, Wo = H * patch_dim, W * patch_dim
    HoWo = Ho * Wo

    # _reshape_output: (B, N, C) -> (B, H, W, C); the pointwise head only needs
    # the flattened channels-last view (M, C).  bf16 MXU operands, f32 accumulate.
    x2d = x.reshape(M, C).astype(jnp.bfloat16)
    w1b = w1.astype(jnp.bfloat16)
    w2b = w2.astype(jnp.bfloat16)

    # gamma / beta / conv2-bias packed into a single small f32 input (one DMA).
    vw = max(C, K)
    vec = jnp.zeros((3, vw), jnp.float32)
    vec = vec.at[0, :C].set(gamma.astype(jnp.float32))
    vec = vec.at[1, :C].set(beta.astype(jnp.float32))
    vec = vec.at[2, :K].set(b2.astype(jnp.float32))

    # Separable bilinear upsample folded into one Kronecker matrix:
    #   out[b,k,o,p] = sum_{h,w} z[b,k,h,w] * A_h[o,h] * A_w[p,w]
    #   => out_row(b,k) = z[b,:,k] @ U,   U[(h,w),(o,p)] = A_h[o,h]*A_w[p,w]
    # All entries are exact in bf16 (products of small dyadic fractions).
    a_h = bilinear_matrix(H, patch_dim)            # (Ho, H)
    a_w = bilinear_matrix(W, patch_dim)            # (Wo, W)  (handles H != W)
    u = jnp.kron(a_h, a_w).T.astype(jnp.bfloat16)  # (H*W, Ho*Wo), 128 KiB here
    # TODO(synk): at production SETR sizes (H=W~30+, HoWo~200k) the dense Kron
    # matrix no longer fits any VMEM tier; switch to the separable two-stage
    # upsample (A_w along lanes, then A_h along sublanes) there.

    def fused_kernel(x_ref, w1_ref, vec_ref, w2_ref, u_ref, o_ref):
        gamma_r = vec_ref[0:1, 0:C]                           # (1, C)
        beta_r = vec_ref[1:2, 0:C]                            # (1, C)
        b2_r = vec_ref[2:3, 0:K]                              # (1, K)
        # 1x1 conv1 (bias omitted: cancelled by the BN mean subtraction below).
        h = jnp.dot(x_ref[...], w1_ref[...], preferred_element_type=jnp.float32)
        # BatchNorm2d, training-mode batch statistics over all B*H*W rows
        # (correct because grid=(1,) keeps the whole M dimension resident).
        # TODO(synk): when M is tiled for production sizes, replace with a
        # sum/sumsq accumulator pass over an "arbitrary" M axis (two-pass BN).
        mean = jnp.mean(h, axis=0, keepdims=True)
        ctr = h - mean
        var = jnp.mean(ctr * ctr, axis=0, keepdims=True)      # biased var, like PyTorch
        h = ctr * jax.lax.rsqrt(var + BN_EPS) * gamma_r + beta_r
        h = jnp.maximum(h, 0.0)                                # ReLU
        # 1x1 conv2 -> (M, K), f32 (bias added here, exactly like the module).
        z = jnp.dot(h.astype(jnp.bfloat16), w2_ref[...],
                    preferred_element_type=jnp.float32) + b2_r
        # Reorganize (B*HW, K) -> (B*K, HW): B tiny static 2-D transposes done
        # in vregs + one concatenate, then ONE lane-dense matmul against U
        # (16 LHS rows per MXU push, single drain, unmasked 1024-lane stores).
        zt = jnp.concatenate(
            [z[b * HW:(b + 1) * HW, :].T for b in range(B)], axis=0)  # (B*K, HW)
        o_ref[...] = jnp.dot(zt.astype(jnp.bfloat16), u_ref[...],
                             preferred_element_type=jnp.float32)

    cost = pl.CostEstimate(
        flops=2 * M * C * C + 2 * M * C * K + 2 * B * K * HW * HoWo,
        transcendentals=C,
        bytes_accessed=(2 * (M * C + C * C + C * K + HW * HoWo)    # bf16 inputs
                        + 4 * (3 * vw + B * K * HoWo)),            # f32 vec + out
    )

    out2d = pl.pallas_call(
        fused_kernel,
        out_shape=jax.ShapeDtypeStruct((B * K, HoWo), jnp.float32),
        grid_spec=pltpu.PrefetchScalarGridSpec(
            num_scalar_prefetch=0,
            grid=(1,),
            in_specs=[
                pl.BlockSpec((M, C), lambda i: (0, 0)),
                pl.BlockSpec((C, C), lambda i: (0, 0)),
                pl.BlockSpec((3, vw), lambda i: (0, 0)),
                pl.BlockSpec((C, K), lambda i: (0, 0)),
                pl.BlockSpec((HW, HoWo), lambda i: (0, 0)),
            ],
            out_specs=pl.BlockSpec((B * K, HoWo), lambda i: (0, 0)),
        ),
        compiler_params=pltpu.CompilerParams(
            dimension_semantics=("arbitrary",),
            vmem_limit_bytes=32 * 1024 * 1024,
        ),
        cost_estimate=cost,
    )(x2d, w1b, vec, w2b, u)

    # TODO(synk): production scaling plan (irrelevant at these shapes): tile M
    # with an extra grid axis + two-pass BN, size tiles for v7x's 64 MiB VMEM
    # (not 128 MiB), and add a "parallel" axis over B*K rows / HoWo lane blocks
    # so work shards across v7x's two TensorCores.  Eval-mode BN (running
    # stats + conv1 bias) and the running-stat momentum update are not modeled.

    # Free row-major reshape to NCHW (B, K, Ho, Wo) -- no transpose needed.
    return out2d.reshape(B, K, Ho, Wo)


def reference_forward(x, params, *, patch_dim, img_dim, num_classes,
                      matmul_dtype=jnp.float32):
    """Pure-JAX reference with the PyTorch module's exact math (incl. b1).
    matmul_dtype=bfloat16 mirrors the kernel's MXU operand precision."""
    w1, b1, gamma, beta, w2, b2 = params
    B, N, C = x.shape
    H = W = img_dim // patch_dim
    K = num_classes
    md = matmul_dtype
    x2d = x.reshape(B * H * W, C)
    h = jnp.dot(x2d.astype(md), w1.astype(md),
                preferred_element_type=jnp.float32) + b1[None, :]
    mean = h.mean(0, keepdims=True)
    var = ((h - mean) ** 2).mean(0, keepdims=True)
    h = (h - mean) / jnp.sqrt(var + BN_EPS) * gamma[None, :] + beta[None, :]
    h = jnp.maximum(h, 0.0)
    z = jnp.dot(h.astype(md), w2.astype(md),
                preferred_element_type=jnp.float32) + b2[None, :]
    z = z.reshape(B, H, W, K).transpose(0, 3, 1, 2)
    z = z.astype(md).astype(jnp.float32)
    a_h = bilinear_matrix(H, patch_dim)
    a_w = bilinear_matrix(W, patch_dim)
    return jnp.einsum("oh,bkhw,pw->bkop", a_h, z, a_w)


if __name__ == "__main__":
    # Module config: SETR_Naive(embedding_dim=32, patch_dim=4, img_dim=32, num_classes=8)
    embedding_dim, patch_dim, img_dim, num_classes = 32, 4, 32, 8
    B = 2
    H = img_dim // patch_dim
    N = H * H

    key = jax.random.PRNGKey(0)
    k_x, k_w1, k_b1, k_g, k_be, k_w2, k_b2 = jax.random.split(key, 7)

    # Deterministic parameter init (1x1 conv weights stored as (C_in, C_out)).
    w1 = jax.random.normal(k_w1, (embedding_dim, embedding_dim), jnp.float32) * 0.05
    b1 = jax.random.normal(k_b1, (embedding_dim,), jnp.float32) * 0.05
    gamma = 1.0 + 0.1 * jax.random.normal(k_g, (embedding_dim,), jnp.float32)
    beta = 0.1 * jax.random.normal(k_be, (embedding_dim,), jnp.float32)
    w2 = jax.random.normal(k_w2, (embedding_dim, num_classes), jnp.float32) * 0.05
    b2 = jax.random.normal(k_b2, (num_classes,), jnp.float32) * 0.05
    params = (w1, b1, gamma, beta, w2, b2)

    x = jax.random.normal(k_x, (B, N, embedding_dim), jnp.float32)

    out = setr_naive_forward(
        x, params, patch_dim=patch_dim, img_dim=img_dim, num_classes=num_classes)
    out = jax.block_until_ready(out)
    assert out.shape == (B, num_classes, img_dim, img_dim)

    # Structural/layout check vs. a reference using the same bf16 MXU operand
    # precision (tight tolerance).
    ref_bf16 = reference_forward(
        x, params, patch_dim=patch_dim, img_dim=img_dim,
        num_classes=num_classes, matmul_dtype=jnp.bfloat16)
    assert jnp.allclose(out, ref_bf16, atol=2e-3, rtol=2e-3), \
        "mismatch vs bf16-matched reference"

    # Module-semantics check vs. the pure-f32 reference (bf16-operand tolerance).
    ref_f32 = reference_forward(
        x, params, patch_dim=patch_dim, img_dim=img_dim,
        num_classes=num_classes, matmul_dtype=jnp.float32)
    assert jnp.allclose(out, ref_f32, atol=3e-2, rtol=3e-2), \
        "mismatch vs f32 reference"

    print("KERNEL_OK")
</pallas_src>

<mosaic_0001>
module attributes {stable_mosaic.version = 11 : i64} {
  func.func @fused_kernel(%arg0: i32, %arg1: memref<128x32xbf16, #tpu.memory_space<vmem>>, %arg2: memref<32x32xbf16, #tpu.memory_space<vmem>>, %arg3: memref<3x32xf32, #tpu.memory_space<vmem>>, %arg4: memref<32x8xbf16, #tpu.memory_space<vmem>>, %arg5: memref<64x1024xbf16, #tpu.memory_space<vmem>>, %arg6: memref<16x1024xf32, #tpu.memory_space<vmem>>) attributes {dimension_semantics = [#tpu.dimension_semantics<arbitrary>], iteration_bounds = array<i64: 1>, scalar_prefetch = 0 : i64, scratch_operands = 0 : i64, tpu.core_type = #tpu.core_type<tc>, window_params = [{pipeline_mode = #tpu.pipeline_mode<synchronous>, transform_indices = @transform_0, window_bounds = array<i64: 128, 32>}, {pipeline_mode = #tpu.pipeline_mode<synchronous>, transform_indices = @transform_1, window_bounds = array<i64: 32, 32>}, {pipeline_mode = #tpu.pipeline_mode<synchronous>, transform_indices = @transform_2, window_bounds = array<i64: 3, 32>}, {pipeline_mode = #tpu.pipeline_mode<synchronous>, transform_indices = @transform_3, window_bounds = array<i64: 32, 8>}, {pipeline_mode = #tpu.pipeline_mode<synchronous>, transform_indices = @transform_4, window_bounds = array<i64: 64, 1024>}, {pipeline_mode = #tpu.pipeline_mode<synchronous>, transform_indices = @transform_5, window_bounds = array<i64: 16, 1024>}]} {
    %c0 = arith.constant 0 : index
    %c0_0 = arith.constant 0 : index
    %0 = vector.load %arg3[%c0, %c0_0] : memref<3x32xf32, #tpu.memory_space<vmem>>, vector<1x32xf32>
    %c1 = arith.constant 1 : index
    %c0_1 = arith.constant 0 : index
    %1 = vector.load %arg3[%c1, %c0_1] : memref<3x32xf32, #tpu.memory_space<vmem>>, vector<1x32xf32>
    %c2 = arith.constant 2 : index
    %c0_2 = arith.constant 0 : index
    %2 = vector.load %arg3[%c2, %c0_2] : memref<3x32xf32, #tpu.memory_space<vmem>>, vector<1x8xf32>
    %c0_3 = arith.constant 0 : index
    %c0_4 = arith.constant 0 : index
    %3 = vector.load %arg1[%c0_3, %c0_4] : memref<128x32xbf16, #tpu.memory_space<vmem>>, vector<128x32xbf16>
    %c0_5 = arith.constant 0 : index
    %c0_6 = arith.constant 0 : index
    %4 = vector.load %arg2[%c0_5, %c0_6] : memref<32x32xbf16, #tpu.memory_space<vmem>>, vector<32x32xbf16>
    %cst = arith.constant dense<0.000000e+00> : vector<128x32xf32>
    %5 = tpu.matmul %3, %4, %cst {dimension_numbers = #tpu.dot_dimension_numbers<[1], [0], [0], [1], [0, 0, 1, 1], [], []>} : vector<128x32xbf16>, vector<32x32xbf16>, vector<128x32xf32> -> vector<128x32xf32>
    %cst_7 = arith.constant dense<0.000000e+00> : vector<32xf32>
    %6 = vector.multi_reduction <add>, %5, %cst_7 [0] : vector<128x32xf32> to vector<32xf32>
    %7 = vector.shape_cast %6 : vector<32xf32> to vector<1x32xf32>
    %cst_8 = arith.constant 1.280000e+02 : f32
    %8 = vector.broadcast %cst_8 : f32 to vector<1x32xf32>
    %9 = arith.divf %7, %8 : vector<1x32xf32>
    %10 = vector.broadcast %9 : vector<1x32xf32> to vector<128x32xf32>
    %11 = arith.subf %5, %10 : vector<128x32xf32>
    %12 = arith.mulf %11, %11 : vector<128x32xf32>
    %cst_9 = arith.constant dense<0.000000e+00> : vector<32xf32>
    %13 = vector.multi_reduction <add>, %12, %cst_9 [0] : vector<128x32xf32> to vector<32xf32>
    %14 = vector.shape_cast %13 : vector<32xf32> to vector<1x32xf32>
    %cst_10 = arith.constant 1.280000e+02 : f32
    %15 = vector.broadcast %cst_10 : f32 to vector<1x32xf32>
    %16 = arith.divf %14, %15 : vector<1x32xf32>
    %cst_11 = arith.constant 9.99999974E-6 : f32
    %17 = vector.broadcast %cst_11 : f32 to vector<1x32xf32>
    %18 = arith.addf %16, %17 : vector<1x32xf32>
    %19 = math.rsqrt %18 : vector<1x32xf32>
    %20 = vector.broadcast %19 : vector<1x32xf32> to vector<128x32xf32>
    %21 = arith.mulf %11, %20 : vector<128x32xf32>
    %22 = vector.broadcast %0 : vector<1x32xf32> to vector<128x32xf32>
    %23 = arith.mulf %21, %22 : vector<128x32xf32>
    %24 = vector.broadcast %1 : vector<1x32xf32> to vector<128x32xf32>
    %25 = arith.addf %23, %24 : vector<128x32xf32>
    %cst_12 = arith.constant 0.000000e+00 : f32
    %26 = vector.broadcast %cst_12 : f32 to vector<128x32xf32>
    %27 = arith.maximumf %25, %26 : vector<128x32xf32>
    %28 = arith.truncf %27 : vector<128x32xf32> to vector<128x32xbf16>
    %c0_13 = arith.constant 0 : index
    %c0_14 = arith.constant 0 : index
    %29 = vector.load %arg4[%c0_13, %c0_14] : memref<32x8xbf16, #tpu.memory_space<vmem>>, vector<32x8xbf16>
    %cst_15 = arith.constant dense<0.000000e+00> : vector<128x8xf32>
    %30 = tpu.matmul %28, %29, %cst_15 {dimension_numbers = #tpu.dot_dimension_numbers<[1], [0], [0], [1], [0, 0, 1, 1], [], []>} : vector<128x32xbf16>, vector<32x8xbf16>, vector<128x8xf32> -> vector<128x8xf32>
    %31 = vector.broadcast %2 : vector<1x8xf32> to vector<128x8xf32>
    %32 = arith.addf %30, %31 : vector<128x8xf32>
    %33 = vector.extract_strided_slice %32 {offsets = [0, 0], sizes = [64, 8], strides = [1, 1]} : vector<128x8xf32> to vector<64x8xf32>
    %34 = tpu.transpose %33, [1, 0] : vector<64x8xf32> -> vector<8x64xf32>
    %35 = vector.extract_strided_slice %32 {offsets = [64, 0], sizes = [64, 8], strides = [1, 1]} : vector<128x8xf32> to vector<64x8xf32>
    %36 = tpu.transpose %35, [1, 0] : vector<64x8xf32> -> vector<8x64xf32>
    %37 = tpu.concatenate %34, %36 in 0 : vector<8x64xf32>, vector<8x64xf32> -> vector<16x64xf32>
    %38 = arith.truncf %37 : vector<16x64xf32> to vector<16x64xbf16>
    %c0_16 = arith.constant 0 : index
    %c0_17 = arith.constant 0 : index
    %39 = vector.load %arg5[%c0_16, %c0_17] : memref<64x1024xbf16, #tpu.memory_space<vmem>>, vector<64x1024xbf16>
    %cst_18 = arith.constant dense<0.000000e+00> : vector<16x1024xf32>
    %40 = tpu.matmul %38, %39, %cst_18 {dimension_numbers = #tpu.dot_dimension_numbers<[1], [0], [0], [1], [0, 0, 1, 1], [], []>} : vector<16x64xbf16>, vector<64x1024xbf16>, vector<16x1024xf32> -> vector<16x1024xf32>
    %c0_19 = arith.constant 0 : index
    %c0_20 = arith.constant 0 : index
    %41 = vector.load %arg6[%c0_19, %c0_20] : memref<16x1024xf32, #tpu.memory_space<vmem>>, vector<16x1024xf32>
    tpu.vector_store %arg6[%c0_19, %c0_20], %40 {strides = array<i32>} : memref<16x1024xf32, #tpu.memory_space<vmem>>, vector<16x1024xf32>,
    return
  }
  func.func @transform_0(%arg0: i32) -> (i32, i32) {
    %c0_i32 = arith.constant 0 : i32
    %c0_i32_0 = arith.constant 0 : i32
    %c0_i32_1 = arith.constant 0 : i32
    return %c0_i32, %c0_i32_0 : i32, i32
  }
  func.func @transform_1(%arg0: i32) -> (i32, i32) {
    %c0_i32 = arith.constant 0 : i32
    %c0_i32_0 = arith.constant 0 : i32
    %c0_i32_1 = arith.constant 0 : i32
    return %c0_i32, %c0_i32_0 : i32, i32
  }
  func.func @transform_2(%arg0: i32) -> (i32, i32) {
    %c0_i32 = arith.constant 0 : i32
    %c0_i32_0 = arith.constant 0 : i32
    %c0_i32_1 = arith.constant 0 : i32
    return %c0_i32, %c0_i32_0 : i32, i32
  }
  func.func @transform_3(%arg0: i32) -> (i32, i32) {
    %c0_i32 = arith.constant 0 : i32
    %c0_i32_0 = arith.constant 0 : i32
    %c0_i32_1 = arith.constant 0 : i32
    return %c0_i32, %c0_i32_0 : i32, i32
  }
  func.func @transform_4(%arg0: i32) -> (i32, i32) {
    %c0_i32 = arith.constant 0 : i32
    %c0_i32_0 = arith.constant 0 : i32
    %c0_i32_1 = arith.constant 0 : i32
    return %c0_i32, %c0_i32_0 : i32, i32
  }
  func.func @transform_5(%arg0: i32) -> (i32, i32) {
    %c0_i32 = arith.constant 0 : i32
    %c0_i32_0 = arith.constant 0 : i32
    %c0_i32_1 = arith.constant 0 : i32
    return %c0_i32, %c0_i32_0 : i32, i32
  }
}

</mosaic_0001>

<llo_original>
// kernel: tpu_custom_call.1
$region0: #{tpu_custom_call.1}
  #allocation0 [shape = 'u32[]', space=smem, size = 0x4, offset = 0x4, fixed_abs, tag = 'smem constant byte address 0x4 - core index']
  #allocation1 [shape = 'u32[144,128]{1,0:T(1,128)}', space=vmem, size = 0x12000, scoped, tag = 'internal scratch']
  %s0 = inlined_call_operand.vmem [shape: bf16[128,32], index: 0, kind: input, shape index: {}]
  %s1 = inlined_call_operand.vmem [shape: bf16[32,32], index: 1, kind: input, shape index: {}]
  %s2 = inlined_call_operand.vmem [shape: f32[3,32], index: 2, kind: input, shape index: {}]
  %s3 = inlined_call_operand.vmem [shape: bf16[32,8], index: 3, kind: input, shape index: {}]
  %s4 = inlined_call_operand.hbm [shape: bf16[64,1024], index: 4, kind: input, shape index: {}]
  %s5 = inlined_call_operand.hbm [shape: f32[16,1024], index: 5, kind: output, shape index: {}]
  %s6 = sld [smem:[#allocation0]]
  $region34: #{tpu_custom_call.1} parent=0
    _
  %s8 = ssub.s32 1, %s6
  %s9 = scalar_select 0, %s8, %s6
  $region1: #{tpu_custom_call.1} parent=0
    #allocation2 [shape = 'u8[131072]{0}', space=vmem, size = 0x20000, scoped, tag = 'input window, operand 4, single buffered']
    #allocation3 [shape = 's32[1]{0}', space=sflag, size = 0x4, scoped, tag = 'scoped memory for tpu_custom_call.1']
    #allocation4 [shape = 's32[1]{0}', space=sflag, size = 0x4, scoped, tag = 'scoped memory for tpu_custom_call.1']
    #allocation5 [shape = 'u8[65536]{0}', space=vmem, size = 0x10000, scoped, tag = 'output window, operand 0, single buffered']
    %10 = vsyncpa [#allocation3], 0
    %11 = vsyncpa [#allocation4], 0
    // Predicated region
    $region2: #{tpu_custom_call.1} parent=1 // pred_check
      _
    $region3: #{tpu_custom_call.1} parent=1 // pred_check_branch
      %13 = sbr.rel (0) target = $region5
    $region4: #{tpu_custom_call.1} parent=1 // pred_region
      _
    $region5: #{tpu_custom_call.1} parent=1 // pred_fallthru
      _
    // Predicated region
    $region6: #{tpu_custom_call.1} parent=1 // pred_check
      _
    $region7: #{tpu_custom_call.1} parent=1 // pred_check_branch
      %15 = sbr.rel (0) target = $region9
    $region8: #{tpu_custom_call.1} parent=1 // pred_region
      _
    $region9: #{tpu_custom_call.1} parent=1 // pred_fallthru
      _
    // Predicated region
    $region10: #{tpu_custom_call.1} parent=1 // pred_check
      _
    $region11: #{tpu_custom_call.1} parent=1 // pred_check_branch
      %17 = sbr.rel (0) target = $region13
    $region12: #{tpu_custom_call.1} parent=1 // pred_region
      _
    $region13: #{tpu_custom_call.1} parent=1 // pred_fallthru
      _
    // Predicated region
    $region14: #{tpu_custom_call.1} parent=1 // pred_check
      _
    $region15: #{tpu_custom_call.1} parent=1 // pred_check_branch
      %19 = sbr.rel (0) target = $region17
    $region16: #{tpu_custom_call.1} parent=1 // pred_region
      _
    $region17: #{tpu_custom_call.1} parent=1 // pred_fallthru
      _
    // Predicated region
    $region18: #{tpu_custom_call.1} parent=1 // pred_check
      _
    $region19: #{tpu_custom_call.1} parent=1 // pred_check_branch
      %21 = sbr.rel (0) target = $region21
    $region20: #{tpu_custom_call.1} parent=1 // pred_region
      %s23 = ssub.s32 4096, 4096
      %24 = vsyncadd [#allocation3], %s23
      %s25 = sshll.u32 [#allocation2], 4
      %s26 = int_to_ptr.vmem [resolvable:$true] %s25
      %31 = dma.hbm_to_vmem [thread:$0]  %s4, 4096, %s26, [#allocation3], 512, 512, 32
    $region21: #{tpu_custom_call.1} parent=1 // pred_fallthru
      _
    // Predicated region
    $region22: #{tpu_custom_call.1} parent=1 // pred_check
      _
    $region23: #{tpu_custom_call.1} parent=1 // pred_check_branch
      %33 = sbr.rel (0) target = $region25
    $region24: #{tpu_custom_call.1} parent=1 // pred_region
      %34 = dma.done [#allocation3], 4096
    $region25: #{tpu_custom_call.1} parent=1 // pred_fallthru
      _
    %v36 = vld [vmem:[%s2] sm:$0x1]
    %v37 = vld [vmem:[%s2 + $0x1] sm:$0x1]
    %v38 = vld [vmem:[%s2 + $0x2] sm:$0x1]
    %v39 = vld [vmem:[%s0] sm:$0xf]
    %v40 = vld [vmem:[%s0 + $0x4] sm:$0xf]
    %v41 = vld [vmem:[%s0 + $0x8] sm:$0xf]
    %v42 = vld [vmem:[%s0 + $0xc] sm:$0xf]
    %v43 = vld [vmem:[%s0 + $0x10] sm:$0xf]
    %v44 = vld [vmem:[%s0 + $0x14] sm:$0xf]
    %v45 = vld [vmem:[%s0 + $0x18] sm:$0xf]
    %v46 = vld [vmem:[%s0 + $0x1c] sm:$0xf]
    %v47 = vld [vmem:[%s0 + $0x20] sm:$0xf]
    %v48 = vld [vmem:[%s0 + $0x24] sm:$0xf]
    %v49 = vld [vmem:[%s0 + $0x28] sm:$0xf]
    %v50 = vld [vmem:[%s0 + $0x2c] sm:$0xf]
    %v51 = vld [vmem:[%s0 + $0x30] sm:$0xf]
    %v52 = vld [vmem:[%s0 + $0x34] sm:$0xf]
    %v53 = vld [vmem:[%s0 + $0x38] sm:$0xf]
    %v54 = vld [vmem:[%s0 + $0x3c] sm:$0xf]
    %v55 = vld [vmem:[%s1] sm:$0xf]
    %v56 = vld [vmem:[%s1 + $0x4] sm:$0xf]
    %v57 = vld [vmem:[%s1 + $0x8] sm:$0xf]
    %v58 = vld [vmem:[%s1 + $0xc] sm:$0xf]
    %v75 = vunpack.c.l.b16 %v39
    %v76 = vunpack.c.l.b16 %v40
    %v77 = vunpack.c.l.b16 %v41
    %v78 = vunpack.c.l.b16 %v42
    %v79 = vunpack.c.l.b16 %v43
    %v80 = vunpack.c.l.b16 %v44
    %v81 = vunpack.c.l.b16 %v45
    %v82 = vunpack.c.l.b16 %v46
    %v83 = vunpack.c.l.b16 %v47
    %v84 = vunpack.c.l.b16 %v48
    %v85 = vunpack.c.l.b16 %v49
    %v86 = vunpack.c.l.b16 %v50
    %v87 = vunpack.c.l.b16 %v51
    %v88 = vunpack.c.l.b16 %v52
    %v89 = vunpack.c.l.b16 %v53
    %v90 = vunpack.c.l.b16 %v54
    %v91 = vpack.c.b16 %v76, %v75
    %v92 = vpack.c.b16 %v78, %v77
    %v93 = vpack.c.b16 %v80, %v79
    %v94 = vpack.c.b16 %v82, %v81
    %v95 = vpack.c.b16 %v84, %v83
    %v96 = vpack.c.b16 %v86, %v85
    %v97 = vpack.c.b16 %v88, %v87
    %v98 = vpack.c.b16 %v90, %v89
    %v103 = vunpack.c.l.b16 %v55
    %v104 = vunpack.c.l.b16 %v56
    %v105 = vunpack.c.l.b16 %v57
    %v106 = vunpack.c.l.b16 %v58
    %v107 = vpack.c.b16 %v104, %v103
    %v108 = vpack.c.b16 %v106, %v105
    %vm111 = vcmask 261120
    %v113 = vsel %vm111, %v91, 0
    %v116 = vsel %vm111, %v92, 0
    %v119 = vsel %vm111, %v93, 0
    %v122 = vsel %vm111, %v94, 0
    %v125 = vsel %vm111, %v95, 0
    %v128 = vsel %vm111, %v96, 0
    %v131 = vsel %vm111, %v97, 0
    %v134 = vsel %vm111, %v98, 0
    %136 = vmatprep.subr.bf16.mxu0 0
    %137 = vmatpush1.bf16.msra.mxu0 %v107
    %138 = vmatprep.subr.bf16.mxu0 0
    %139 = vmatpush1.bf16.msra.mxu0 %v108
    %140 = vmatprep.subr.bf16.mxu0 0
    %141 = vmatpush1.bf16.msra.mxu0 0
    %142 = vmatprep.subr.bf16.mxu0 0
    %143 = vmatpush1.bf16.msra.mxu0 0
    %144 = vmatprep.subr.bf16.mxu0 0
    %145 = vmatpush1.bf16.msra.mxu0 0
    %146 = vmatprep.subr.bf16.mxu0 0
    %147 = vmatpush1.bf16.msra.mxu0 0
    %148 = vmatprep.subr.bf16.mxu0 0
    %149 = vmatpush1.bf16.msra.mxu0 0
    %150 = vmatprep.subr.bf16.mxu0 0
    %151 = vmatpush1.bf16.msra.mxu0 0
    %152 = vmatprep.subr.bf16.mxu0 0
    %153 = vmatpush1.bf16.msra.mxu0 0
    %154 = vmatprep.subr.bf16.mxu0 0
    %155 = vmatpush1.bf16.msra.mxu0 0
    %156 = vmatprep.subr.bf16.mxu0 0
    %157 = vmatpush1.bf16.msra.mxu0 0
    %158 = vmatprep.subr.bf16.mxu0 0
    %159 = vmatpush1.bf16.msra.mxu0 0
    %160 = vmatprep.subr.bf16.mxu0 0
    %161 = vmatpush1.bf16.msra.mxu0 0
    %162 = vmatprep.subr.bf16.mxu0 0
    %163 = vmatpush1.bf16.msra.mxu0 0
    %164 = vmatprep.subr.bf16.mxu0 0
    %165 = vmatpush1.bf16.msra.mxu0 0
    %166 = vmatprep.subr.bf16.mxu0 0
    %167 = vmatpush1.bf16.msra.mxu0 0
    %168 = vmatprep.mubr.bf16.mxu0 0
    %169 = vmatmul.mubr.bf16.gmra.mrb[0].mxu0 %v113
    %v170 = vpop.f32.mrb[0].mxu0
    %v171 = vadd.f32 0.0, %v170
    %v172 = vpop.f32.mrb[0].mxu0
    %v173 = vpop.f32.mrb[0].mxu0
    %v174 = vadd.f32 0.0, %v173
    %v175 = vpop.f32.mrb[0].mxu0
    %176 = vmatprep.mubr.bf16.mxu0 0
    %177 = vmatmul.mubr.bf16.gmra.mrb[0].mxu0 %v116
    %v178 = vpop.f32.mrb[0].mxu0
    %v179 = vadd.f32 0.0, %v178
    %v180 = vpop.f32.mrb[0].mxu0
    %v181 = vpop.f32.mrb[0].mxu0
    %v182 = vadd.f32 0.0, %v181
    %v183 = vpop.f32.mrb[0].mxu0
    %184 = vmatprep.mubr.bf16.mxu0 0
    %185 = vmatmul.mubr.bf16.gmra.mrb[0].mxu0 %v119
    %v186 = vpop.f32.mrb[0].mxu0
    %v187 = vadd.f32 0.0, %v186
    %v188 = vpop.f32.mrb[0].mxu0
    %v189 = vpop.f32.mrb[0].mxu0
    %v190 = vadd.f32 0.0, %v189
    %v191 = vpop.f32.mrb[0].mxu0
    %192 = vmatprep.mubr.bf16.mxu0 0
    %193 = vmatmul.mubr.bf16.gmra.mrb[0].mxu0 %v122
    %v194 = vpop.f32.mrb[0].mxu0
    %v195 = vadd.f32 0.0, %v194
    %v196 = vpop.f32.mrb[0].mxu0
    %v197 = vpop.f32.mrb[0].mxu0
    %v198 = vadd.f32 0.0, %v197
    %v199 = vpop.f32.mrb[0].mxu0
    %200 = vmatprep.mubr.bf16.mxu0 0
    %201 = vmatmul.mubr.bf16.gmra.mrb[0].mxu0 %v125
    %v202 = vpop.f32.mrb[0].mxu0
    %v203 = vadd.f32 0.0, %v202
    %v204 = vpop.f32.mrb[0].mxu0
    %v205 = vpop.f32.mrb[0].mxu0
    %v206 = vadd.f32 0.0, %v205
    %v207 = vpop.f32.mrb[0].mxu0
    %208 = vmatprep.mubr.bf16.mxu0 0
    %209 = vmatmul.mubr.bf16.gmra.mrb[0].mxu0 %v128
    %v210 = vpop.f32.mrb[0].mxu0
    %v211 = vadd.f32 0.0, %v210
    %v212 = vpop.f32.mrb[0].mxu0
    %v213 = vpop.f32.mrb[0].mxu0
    %v214 = vadd.f32 0.0, %v213
    %v215 = vpop.f32.mrb[0].mxu0
    %216 = vmatprep.mubr.bf16.mxu0 0
    %217 = vmatmul.mubr.bf16.gmra.mrb[0].mxu0 %v131
    %v218 = vpop.f32.mrb[0].mxu0
    %v219 = vadd.f32 0.0, %v218
    %v220 = vpop.f32.mrb[0].mxu0
    %v221 = vpop.f32.mrb[0].mxu0
    %v222 = vadd.f32 0.0, %v221
    %v223 = vpop.f32.mrb[0].mxu0
    %224 = vmatprep.mubr.bf16.mxu0 0
    %225 = vmatmul.mubr.bf16.gmra.mrb[0].mxu0 %v134
    %v226 = vpop.f32.mrb[0].mxu0
    %v227 = vadd.f32 0.0, %v226
    %v228 = vpop.f32.mrb[0].mxu0
    %v229 = vpop.f32.mrb[0].mxu0
    %v230 = vadd.f32 0.0, %v229
    %v231 = vpop.f32.mrb[0].mxu0
    %232 = vdwg.mxu0
    %v233 = vsel %vm111, %v171, 0.0
    %v234 = vsel %vm111, %v174, 0.0
    %v235 = vadd.f32 %v233, %v234
    %v236 = vsel %vm111, %v179, 0.0
    %v237 = vadd.f32 %v235, %v236
    %v238 = vsel %vm111, %v182, 0.0
    %v239 = vadd.f32 %v237, %v238
    %v240 = vsel %vm111, %v187, 0.0
    %v241 = vadd.f32 %v239, %v240
    %v242 = vsel %vm111, %v190, 0.0
    %v243 = vadd.f32 %v241, %v242
    %v244 = vsel %vm111, %v195, 0.0
    %v245 = vadd.f32 %v243, %v244
    %v246 = vsel %vm111, %v198, 0.0
    %v247 = vadd.f32 %v245, %v246
    %v248 = vsel %vm111, %v203, 0.0
    %v249 = vadd.f32 %v247, %v248
    %v250 = vsel %vm111, %v206, 0.0
    %v251 = vadd.f32 %v249, %v250
    %v252 = vsel %vm111, %v211, 0.0
    %v253 = vadd.f32 %v251, %v252
    %v254 = vsel %vm111, %v214, 0.0
    %v255 = vadd.f32 %v253, %v254
    %v256 = vsel %vm111, %v219, 0.0
    %v257 = vadd.f32 %v255, %v256
    %v258 = vsel %vm111, %v222, 0.0
    %v259 = vadd.f32 %v257, %v258
    %v260 = vsel %vm111, %v227, 0.0
    %v261 = vadd.f32 %v259, %v260
    %v262 = vsel %vm111, %v230, 0.0
    %v263 = vadd.f32 %v261, %v262
    %v264 = vrot.slane %v263, 4
    %v265 = vadd.f32 %v263, %v264
    %v266 = vrot.slane %v265, 2
    %v267 = vadd.f32 %v265, %v266
    %v268 = vrot.slane %v267, 1
    %v269 = vadd.f32 %v267, %v268
    %v270 = vrcp.pop 128.0
    %v271 = vmul.f32 %v269, %v270
    %v272 = vsub.f32 %v171, %v271
    %v273 = vsub.f32 %v174, %v271
    %v274 = vsub.f32 %v179, %v271
    %v275 = vsub.f32 %v182, %v271
    %v276 = vsub.f32 %v187, %v271
    %v277 = vsub.f32 %v190, %v271
    %v278 = vsub.f32 %v195, %v271
    %v279 = vsub.f32 %v198, %v271
    %v280 = vsub.f32 %v203, %v271
    %v281 = vsub.f32 %v206, %v271
    %v282 = vsub.f32 %v211, %v271
    %v283 = vsub.f32 %v214, %v271
    %v284 = vsub.f32 %v219, %v271
    %v285 = vsub.f32 %v222, %v271
    %v286 = vsub.f32 %v227, %v271
    %v287 = vsub.f32 %v230, %v271
    %v288 = vmul.f32 %v272, %v272
    %v289 = vmul.f32 %v273, %v273
    %v290 = vmul.f32 %v274, %v274
    %v291 = vmul.f32 %v275, %v275
    %v292 = vmul.f32 %v276, %v276
    %v293 = vmul.f32 %v277, %v277
    %v294 = vmul.f32 %v278, %v278
    %v295 = vmul.f32 %v279, %v279
    %v296 = vmul.f32 %v280, %v280
    %v297 = vmul.f32 %v281, %v281
    %v298 = vmul.f32 %v282, %v282
    %v299 = vmul.f32 %v283, %v283
    %v300 = vmul.f32 %v284, %v284
    %v301 = vmul.f32 %v285, %v285
    %v302 = vmul.f32 %v286, %v286
    %v303 = vmul.f32 %v287, %v287
    %v304 = vsel %vm111, %v288, 0.0
    %v305 = vsel %vm111, %v289, 0.0
    %v306 = vadd.f32 %v304, %v305
    %v307 = vsel %vm111, %v290, 0.0
    %v308 = vadd.f32 %v306, %v307
    %v309 = vsel %vm111, %v291, 0.0
    %v310 = vadd.f32 %v308, %v309
    %v311 = vsel %vm111, %v292, 0.0
    %v312 = vadd.f32 %v310, %v311
    %v313 = vsel %vm111, %v293, 0.0
    %v314 = vadd.f32 %v312, %v313
    %v315 = vsel %vm111, %v294, 0.0
    %v316 = vadd.f32 %v314, %v315
    %v317 = vsel %vm111, %v295, 0.0
    %v318 = vadd.f32 %v316, %v317
    %v319 = vsel %vm111, %v296, 0.0
    %v320 = vadd.f32 %v318, %v319
    %v321 = vsel %vm111, %v297, 0.0
    %v322 = vadd.f32 %v320, %v321
    %v323 = vsel %vm111, %v298, 0.0
    %v324 = vadd.f32 %v322, %v323
    %v325 = vsel %vm111, %v299, 0.0
    %v326 = vadd.f32 %v324, %v325
    %v327 = vsel %vm111, %v300, 0.0
    %v328 = vadd.f32 %v326, %v327
    %v329 = vsel %vm111, %v301, 0.0
    %v330 = vadd.f32 %v328, %v329
    %v331 = vsel %vm111, %v302, 0.0
    %v332 = vadd.f32 %v330, %v331
    %v333 = vsel %vm111, %v303, 0.0
    %v334 = vadd.f32 %v332, %v333
    %v335 = vrot.slane %v334, 4
    %v336 = vadd.f32 %v334, %v335
    %v337 = vrot.slane %v336, 2
    %v338 = vadd.f32 %v336, %v337
    %v339 = vrot.slane %v338, 1
    %v340 = vadd.f32 %v338, %v339
    %v341 = vmul.f32 %v340, %v270
    %v342 = vadd.f32 %v341, 1e-05
    %v343 = vrsqrt.pop %v342
    %v344 = vmul.f32 %v272, %v343
    %v345 = vmul.f32 %v273, %v343
    %v346 = vmul.f32 %v274, %v343
    %v347 = vmul.f32 %v275, %v343
    %v348 = vmul.f32 %v276, %v343
    %v349 = vmul.f32 %v277, %v343
    %v350 = vmul.f32 %v278, %v343
    %v351 = vmul.f32 %v279, %v343
    %v352 = vmul.f32 %v280, %v343
    %v353 = vmul.f32 %v281, %v343
    %v354 = vmul.f32 %v282, %v343
    %v355 = vmul.f32 %v283, %v343
    %v356 = vmul.f32 %v284, %v343
    %v357 = vmul.f32 %v285, %v343
    %v358 = vmul.f32 %v286, %v343
    %v359 = vmul.f32 %v287, %v343
    %v360 = vlaneseq
    %v361 = vshrl.u32 %v360, 7
    %v362 = vsub.s32 0, %v361
    %v363 = vrot.slane %v36, %v362
    %v364 = vmul.f32 %v344, %v363
    %v365 = vmul.f32 %v345, %v363
    %v366 = vmul.f32 %v346, %v363
    %v367 = vmul.f32 %v347, %v363
    %v368 = vmul.f32 %v348, %v363
    %v369 = vmul.f32 %v349, %v363
    %v370 = vmul.f32 %v350, %v363
    %v371 = vmul.f32 %v351, %v363
    %v372 = vmul.f32 %v352, %v363
    %v373 = vmul.f32 %v353, %v363
    %v374 = vmul.f32 %v354, %v363
    %v375 = vmul.f32 %v355, %v363
    %v376 = vmul.f32 %v356, %v363
    %v377 = vmul.f32 %v357, %v363
    %v378 = vmul.f32 %v358, %v363
    %v379 = vmul.f32 %v359, %v363
    %v380 = vlaneseq
    %v381 = vshrl.u32 %v380, 7
    %v382 = vsub.s32 0, %v381
    %v383 = vrot.slane %v37, %v382
    %v384 = vadd.f32 %v364, %v383
    %v385 = vadd.f32 %v365, %v383
    %v386 = vadd.f32 %v366, %v383
    %v387 = vadd.f32 %v367, %v383
    %v388 = vadd.f32 %v368, %v383
    %v389 = vadd.f32 %v369, %v383
    %v390 = vadd.f32 %v370, %v383
    %v391 = vadd.f32 %v371, %v383
    %v392 = vadd.f32 %v372, %v383
    %v393 = vadd.f32 %v373, %v383
    %v394 = vadd.f32 %v374, %v383
    %v395 = vadd.f32 %v375, %v383
    %v396 = vadd.f32 %v376, %v383
    %v397 = vadd.f32 %v377, %v383
    %v398 = vadd.f32 %v378, %v383
    %v399 = vadd.f32 %v379, %v383
    %v400 = vmax.f32 %v384, 0.0
    %v401 = vmax.f32 %v385, 0.0
    %v402 = vmax.f32 %v386, 0.0
    %v403 = vmax.f32 %v387, 0.0
    %v404 = vmax.f32 %v388, 0.0
    %v405 = vmax.f32 %v389, 0.0
    %v406 = vmax.f32 %v390, 0.0
    %v407 = vmax.f32 %v391, 0.0
    %v408 = vmax.f32 %v392, 0.0
    %v409 = vmax.f32 %v393, 0.0
    %v410 = vmax.f32 %v394, 0.0
    %v411 = vmax.f32 %v395, 0.0
    %v412 = vmax.f32 %v396, 0.0
    %v413 = vmax.f32 %v397, 0.0
    %v414 = vmax.f32 %v398, 0.0
    %v415 = vmax.f32 %v399, 0.0
    %v416 = vpack.c.bf16 %v401, %v400
    %v417 = vpack.c.bf16 %v403, %v402
    %v418 = vpack.c.bf16 %v405, %v404
    %v419 = vpack.c.bf16 %v407, %v406
    %v420 = vpack.c.bf16 %v409, %v408
    %v421 = vpack.c.bf16 %v411, %v410
    %v422 = vpack.c.bf16 %v413, %v412
    %v423 = vpack.c.bf16 %v415, %v414
    %v424 = vld [vmem:[%s3] sm:$0xf]
    %v425 = vld [vmem:[%s3 + $0x4] sm:$0xf]
    %v426 = vld [vmem:[%s3 + $0x8] sm:$0xf]
    %v427 = vld [vmem:[%s3 + $0xc] sm:$0xf]
    %v428 = vlaneseq
    %v429 = vshrl.u32 %v428, 7
    %v430 = vsub.s32 0, %v429
    %v431 = vrot.slane %v38, %v430
    %v436 = vunpack.c.l.b16 %v424
    %v437 = vunpack.c.l.b16 %v425
    %v438 = vunpack.c.l.b16 %v426
    %v439 = vunpack.c.l.b16 %v427
    %v440 = vpack.c.b16 %v437, %v436
    %v441 = vpack.c.b16 %v439, %v438
    %v445 = vsel %vm111, %v416, 0
    %v448 = vsel %vm111, %v417, 0
    %v451 = vsel %vm111, %v418, 0
    %v454 = vsel %vm111, %v419, 0
    %v457 = vsel %vm111, %v420, 0
    %v460 = vsel %vm111, %v421, 0
    %v463 = vsel %vm111, %v422, 0
    %v466 = vsel %vm111, %v423, 0
    %468 = vmatprep.subr.bf16.mxu0 0
    %469 = vmatpush1.bf16.msra.mxu0 %v440
    %470 = vmatprep.subr.bf16.mxu0 0
    %471 = vmatpush1.bf16.msra.mxu0 %v441
    %472 = vmatprep.subr.bf16.mxu0 0
    %473 = vmatpush1.bf16.msra.mxu0 0
    %474 = vmatprep.subr.bf16.mxu0 0
    %475 = vmatpush1.bf16.msra.mxu0 0
    %476 = vmatprep.subr.bf16.mxu0 0
    %477 = vmatpush1.bf16.msra.mxu0 0
    %478 = vmatprep.subr.bf16.mxu0 0
    %479 = vmatpush1.bf16.msra.mxu0 0
    %480 = vmatprep.subr.bf16.mxu0 0
    %481 = vmatpush1.bf16.msra.mxu0 0
    %482 = vmatprep.subr.bf16.mxu0 0
    %483 = vmatpush1.bf16.msra.mxu0 0
    %484 = vmatprep.subr.bf16.mxu0 0
    %485 = vmatpush1.bf16.msra.mxu0 0
    %486 = vmatprep.subr.bf16.mxu0 0
    %487 = vmatpush1.bf16.msra.mxu0 0
    %488 = vmatprep.subr.bf16.mxu0 0
    %489 = vmatpush1.bf16.msra.mxu0 0
    %490 = vmatprep.subr.bf16.mxu0 0
    %491 = vmatpush1.bf16.msra.mxu0 0
    %492 = vmatprep.subr.bf16.mxu0 0
    %493 = vmatpush1.bf16.msra.mxu0 0
    %494 = vmatprep.subr.bf16.mxu0 0
    %495 = vmatpush1.bf16.msra.mxu0 0
    %496 = vmatprep.subr.bf16.mxu0 0
    %497 = vmatpush1.bf16.msra.mxu0 0
    %498 = vmatprep.subr.bf16.mxu0 0
    %499 = vmatpush1.bf16.msra.mxu0 0
    %500 = vmatprep.mubr.bf16.mxu0 0
    %501 = vmatmul.mubr.bf16.gmra.mrb[0].mxu0 %v445
    %v502 = vpop.f32.mrb[0].mxu0
    %v503 = vadd.f32 %v431, %v502
    %v504 = vpop.f32.mrb[0].mxu0
    %v505 = vpop.f32.mrb[0].mxu0
    %v506 = vadd.f32 %v431, %v505
    %v507 = vpop.f32.mrb[0].mxu0
    %508 = vmatprep.mubr.bf16.mxu0 0
    %509 = vmatmul.mubr.bf16.gmra.mrb[0].mxu0 %v448
    %v510 = vpop.f32.mrb[0].mxu0
    %v511 = vadd.f32 %v431, %v510
    %v512 = vpop.f32.mrb[0].mxu0
    %v513 = vpop.f32.mrb[0].mxu0
    %v514 = vadd.f32 %v431, %v513
    %v515 = vpop.f32.mrb[0].mxu0
    %516 = vmatprep.mubr.bf16.mxu0 0
    %517 = vmatmul.mubr.bf16.gmra.mrb[0].mxu0 %v451
    %v518 = vpop.f32.mrb[0].mxu0
    %v519 = vadd.f32 %v431, %v518
    %v520 = vpop.f32.mrb[0].mxu0
    %v521 = vpop.f32.mrb[0].mxu0
    %v522 = vadd.f32 %v431, %v521
    %v523 = vpop.f32.mrb[0].mxu0
    %524 = vmatprep.mubr.bf16.mxu0 0
    %525 = vmatmul.mubr.bf16.gmra.mrb[0].mxu0 %v454
    %v526 = vpop.f32.mrb[0].mxu0
    %v527 = vadd.f32 %v431, %v526
    %v528 = vpop.f32.mrb[0].mxu0
    %v529 = vpop.f32.mrb[0].mxu0
    %v530 = vadd.f32 %v431, %v529
    %v531 = vpop.f32.mrb[0].mxu0
    %532 = vmatprep.mubr.bf16.mxu0 0
    %533 = vmatmul.mubr.bf16.gmra.mrb[0].mxu0 %v457
    %v534 = vpop.f32.mrb[0].mxu0
    %v535 = vadd.f32 %v431, %v534
    %v536 = vpop.f32.mrb[0].mxu0
    %v537 = vpop.f32.mrb[0].mxu0
    %v538 = vadd.f32 %v431, %v537
    %v539 = vpop.f32.mrb[0].mxu0
    %540 = vmatprep.mubr.bf16.mxu0 0
    %541 = vmatmul.mubr.bf16.gmra.mrb[0].mxu0 %v460
    %v542 = vpop.f32.mrb[0].mxu0
    %v543 = vadd.f32 %v431, %v542
    %v544 = vpop.f32.mrb[0].mxu0
    %v545 = vpop.f32.mrb[0].mxu0
    %v546 = vadd.f32 %v431, %v545
    %v547 = vpop.f32.mrb[0].mxu0
    %548 = vmatprep.mubr.bf16.mxu0 0
    %549 = vmatmul.mubr.bf16.gmra.mrb[0].mxu0 %v463
    %v550 = vpop.f32.mrb[0].mxu0
    %v551 = vadd.f32 %v431, %v550
    %v552 = vpop.f32.mrb[0].mxu0
    %v553 = vpop.f32.mrb[0].mxu0
    %v554 = vadd.f32 %v431, %v553
    %v555 = vpop.f32.mrb[0].mxu0
    %556 = vmatprep.mubr.bf16.mxu0 0
    %557 = vmatmul.mubr.bf16.gmra.mrb[0].mxu0 %v466
    %v558 = vpop.f32.mrb[0].mxu0
    %v559 = vadd.f32 %v431, %v558
    %v560 = vpop.f32.mrb[0].mxu0
    %v561 = vpop.f32.mrb[0].mxu0
    %v562 = vadd.f32 %v431, %v561
    %v563 = vpop.f32.mrb[0].mxu0
    %564 = vdwg.mxu0
    %565 = vxpose.xlu0.b32.start [1/16] %v503, 128
    %566 = vxpose.xlu0.b32.cont [2/16] %v506, 128
    %567 = vxpose.xlu0.b32.cont [3/16] %v511, 128
    %568 = vxpose.xlu0.b32.cont [4/16] %v514, 128
    %569 = vxpose.xlu0.b32.cont [5/16] %v519, 128
    %570 = vxpose.xlu0.b32.cont [6/16] %v522, 128
    %571 = vxpose.xlu0.b32.cont [7/16] %v527, 128
    %572 = vxpose.xlu0.b32.cont [8/16] %v530, 128
    %573 = vxpose.xlu0.b32.cont [9/16] 0.0, 128
    %574 = vxpose.xlu0.b32.cont [10/16] 0.0, 128
    %575 = vxpose.xlu0.b32.cont [11/16] 0.0, 128
    %576 = vxpose.xlu0.b32.cont [12/16] 0.0, 128
    %577 = vxpose.xlu0.b32.cont [13/16] 0.0, 128
    %578 = vxpose.xlu0.b32.cont [14/16] 0.0, 128
    %579 = vxpose.xlu0.b32.cont [15/16] 0.0, 128
    %580 = vxpose.xlu0.b32.end [16/16] 0.0, 128
    %v581 = vpop.trf.xlu0
    %v582 = vpop.trf.xlu0
    %v583 = vpop.trf.xlu0
    %v584 = vpop.trf.xlu0
    %v585 = vpop.trf.xlu0
    %v586 = vpop.trf.xlu0
    %v587 = vpop.trf.xlu0
    %v588 = vpop.trf.xlu0
    %v589 = vpop.trf.xlu0
    %v590 = vpop.trf.xlu0
    %v591 = vpop.trf.xlu0
    %v592 = vpop.trf.xlu0
    %v593 = vpop.trf.xlu0
    %v594 = vpop.trf.xlu0
    %v595 = vpop.trf.xlu0
    %v596 = vpop.trf.xlu0
    %597 = vxpose.xlu0.b32.start [1/16] %v535, 128
    %598 = vxpose.xlu0.b32.cont [2/16] %v538, 128
    %599 = vxpose.xlu0.b32.cont [3/16] %v543, 128
    %600 = vxpose.xlu0.b32.cont [4/16] %v546, 128
    %601 = vxpose.xlu0.b32.cont [5/16] %v551, 128
    %602 = vxpose.xlu0.b32.cont [6/16] %v554, 128
    %603 = vxpose.xlu0.b32.cont [7/16] %v559, 128
    %604 = vxpose.xlu0.b32.cont [8/16] %v562, 128
    %605 = vxpose.xlu0.b32.cont [9/16] 0.0, 128
    %606 = vxpose.xlu0.b32.cont [10/16] 0.0, 128
    %607 = vxpose.xlu0.b32.cont [11/16] 0.0, 128
    %608 = vxpose.xlu0.b32.cont [12/16] 0.0, 128
    %609 = vxpose.xlu0.b32.cont [13/16] 0.0, 128
    %610 = vxpose.xlu0.b32.cont [14/16] 0.0, 128
    %611 = vxpose.xlu0.b32.cont [15/16] 0.0, 128
    %612 = vxpose.xlu0.b32.end [16/16] 0.0, 128
    %v613 = vpop.trf.xlu0
    %v614 = vpop.trf.xlu0
    %v615 = vpop.trf.xlu0
    %v616 = vpop.trf.xlu0
    %v617 = vpop.trf.xlu0
    %v618 = vpop.trf.xlu0
    %v619 = vpop.trf.xlu0
    %v620 = vpop.trf.xlu0
    %v621 = vpop.trf.xlu0
    %v622 = vpop.trf.xlu0
    %v623 = vpop.trf.xlu0
    %v624 = vpop.trf.xlu0
    %v625 = vpop.trf.xlu0
    %v626 = vpop.trf.xlu0
    %v627 = vpop.trf.xlu0
    %v628 = vpop.trf.xlu0
    %v629 = vpack.c.bf16 %v613, %v581
    %v630 = vld [vmem:[#allocation2] sm:$0xff]
    %v631 = vld [vmem:[#allocation2 + $0x8] sm:$0xff]
    %v632 = vld [vmem:[#allocation2 + $0x10] sm:$0xff]
    %v633 = vld [vmem:[#allocation2 + $0x18] sm:$0xff]
    %v634 = vld [vmem:[#allocation2 + $0x20] sm:$0xff]
    %v635 = vld [vmem:[#allocation2 + $0x28] sm:$0xff]
    %v636 = vld [vmem:[#allocation2 + $0x30] sm:$0xff]
    %v637 = vld [vmem:[#allocation2 + $0x38] sm:$0xff]
    %v638 = vld [vmem:[#allocation2 + $0x40] sm:$0xff]
    %v639 = vld [vmem:[#allocation2 + $0x48] sm:$0xff]
    %v640 = vld [vmem:[#allocation2 + $0x50] sm:$0xff]
    %v641 = vld [vmem:[#allocation2 + $0x58] sm:$0xff]
    %v642 = vld [vmem:[#allocation2 + $0x60] sm:$0xff]
    %v643 = vld [vmem:[#allocation2 + $0x68] sm:$0xff]
    %v644 = vld [vmem:[#allocation2 + $0x70] sm:$0xff]
    %v645 = vld [vmem:[#allocation2 + $0x78] sm:$0xff]
    %v646 = vld [vmem:[#allocation2 + $0x80] sm:$0xff]
    %v647 = vld [vmem:[#allocation2 + $0x88] sm:$0xff]
    %v648 = vld [vmem:[#allocation2 + $0x90] sm:$0xff]
    %v649 = vld [vmem:[#allocation2 + $0x98] sm:$0xff]
    %v650 = vld [vmem:[#allocation2 + $0xa0] sm:$0xff]
    %v651 = vld [vmem:[#allocation2 + $0xa8] sm:$0xff]
    %v652 = vld [vmem:[#allocation2 + $0xb0] sm:$0xff]
    %v653 = vld [vmem:[#allocation2 + $0xb8] sm:$0xff]
    %v654 = vld [vmem:[#allocation2 + $0xc0] sm:$0xff]
    %v655 = vld [vmem:[#allocation2 + $0xc8] sm:$0xff]
    %v656 = vld [vmem:[#allocation2 + $0xd0] sm:$0xff]
    %v657 = vld [vmem:[#allocation2 + $0xd8] sm:$0xff]
    %v658 = vld [vmem:[#allocation2 + $0xe0] sm:$0xff]
    %v659 = vld [vmem:[#allocation2 + $0xe8] sm:$0xff]
    %v660 = vld [vmem:[#allocation2 + $0xf0] sm:$0xff]
    %v661 = vld [vmem:[#allocation2 + $0xf8] sm:$0xff]
    %v694 = vunpack.c.l.b16 %v630
    %v695 = vunpack.c.h.b16 %v630
    %v696 = vunpack.c.l.b16 %v631
    %v697 = vunpack.c.h.b16 %v631
    %v698 = vunpack.c.l.b16 %v632
    %v699 = vunpack.c.h.b16 %v632
    %v700 = vunpack.c.l.b16 %v633
    %v701 = vunpack.c.h.b16 %v633
    %v702 = vunpack.c.l.b16 %v634
    %v703 = vunpack.c.h.b16 %v634
    %v704 = vunpack.c.l.b16 %v635
    %v705 = vunpack.c.h.b16 %v635
    %v706 = vunpack.c.l.b16 %v636
    %v707 = vunpack.c.h.b16 %v636
    %v708 = vunpack.c.l.b16 %v637
    %v709 = vunpack.c.h.b16 %v637
    %v710 = vunpack.c.l.b16 %v638
    %v711 = vunpack.c.h.b16 %v638
    %v712 = vunpack.c.l.b16 %v639
    %v713 = vunpack.c.h.b16 %v639
    %v714 = vunpack.c.l.b16 %v640
    %v715 = vunpack.c.h.b16 %v640
    %v716 = vunpack.c.l.b16 %v641
    %v717 = vunpack.c.h.b16 %v641
    %v718 = vunpack.c.l.b16 %v642
    %v719 = vunpack.c.h.b16 %v642
    %v720 = vunpack.c.l.b16 %v643
    %v721 = vunpack.c.h.b16 %v643
    %v722 = vunpack.c.l.b16 %v644
    %v723 = vunpack.c.h.b16 %v644
    %v724 = vunpack.c.l.b16 %v645
    %v725 = vunpack.c.h.b16 %v645
    %v726 = vunpack.c.l.b16 %v646
    %v727 = vunpack.c.h.b16 %v646
    %v728 = vunpack.c.l.b16 %v647
    %v729 = vunpack.c.h.b16 %v647
    %v730 = vunpack.c.l.b16 %v648
    %v731 = vunpack.c.h.b16 %v648
    %v732 = vunpack.c.l.b16 %v649
    %v733 = vunpack.c.h.b16 %v649
    %v734 = vunpack.c.l.b16 %v650
    %v735 = vunpack.c.h.b16 %v650
    %v736 = vunpack.c.l.b16 %v651
    %v737 = vunpack.c.h.b16 %v651
    %v738 = vunpack.c.l.b16 %v652
    %v739 = vunpack.c.h.b16 %v652
    %v740 = vunpack.c.l.b16 %v653
    %v741 = vunpack.c.h.b16 %v653
    %v742 = vunpack.c.l.b16 %v654
    %v743 = vunpack.c.h.b16 %v654
    %v744 = vunpack.c.l.b16 %v655
    %v745 = vunpack.c.h.b16 %v655
    %v746 = vunpack.c.l.b16 %v656
    %v747 = vunpack.c.h.b16 %v656
    %v748 = vunpack.c.l.b16 %v657
    %v749 = vunpack.c.h.b16 %v657
    %v750 = vunpack.c.l.b16 %v658
    %v751 = vunpack.c.h.b16 %v658
    %v752 = vunpack.c.l.b16 %v659
    %v753 = vunpack.c.h.b16 %v659
    %v754 = vunpack.c.l.b16 %v660
    %v755 = vunpack.c.h.b16 %v660
    %v756 = vunpack.c.l.b16 %v661
    %v757 = vunpack.c.h.b16 %v661
    %v758 = vpack.c.b16 %v702, %v694
    %v759 = vpack.c.b16 %v703, %v695
    %v760 = vpack.c.b16 %v704, %v696
    %v761 = vpack.c.b16 %v705, %v697
    %v762 = vpack.c.b16 %v706, %v698
    %v763 = vpack.c.b16 %v707, %v699
    %v764 = vpack.c.b16 %v708, %v700
    %v765 = vpack.c.b16 %v709, %v701
    %v766 = vpack.c.b16 %v718, %v710
    %v767 = vpack.c.b16 %v719, %v711
    %v768 = vpack.c.b16 %v720, %v712
    %v769 = vpack.c.b16 %v721, %v713
    %v770 = vpack.c.b16 %v722, %v714
    %v771 = vpack.c.b16 %v723, %v715
    %v772 = vpack.c.b16 %v724, %v716
    %v773 = vpack.c.b16 %v725, %v717
    %v774 = vpack.c.b16 %v734, %v726
    %v775 = vpack.c.b16 %v735, %v727
    %v776 = vpack.c.b16 %v736, %v728
    %v777 = vpack.c.b16 %v737, %v729
    %v778 = vpack.c.b16 %v738, %v730
    %v779 = vpack.c.b16 %v739, %v731
    %v780 = vpack.c.b16 %v740, %v732
    %v781 = vpack.c.b16 %v741, %v733
    %v782 = vpack.c.b16 %v750, %v742
    %v783 = vpack.c.b16 %v751, %v743
    %v784 = vpack.c.b16 %v752, %v744
    %v785 = vpack.c.b16 %v753, %v745
    %v786 = vpack.c.b16 %v754, %v746
    %v787 = vpack.c.b16 %v755, %v747
    %v788 = vpack.c.b16 %v756, %v748
    %v789 = vpack.c.b16 %v757, %v749
    %vm822 = vcmask 523264
    %v824 = vsel %vm822, %v629, 0
    %826 = vmatprep.subr.bf16.mxu0 %v759
    %827 = vmatpush1.bf16.msra.mxu0 %v758
    %828 = vmatprep.subr.bf16.mxu0 %v767
    %829 = vmatpush1.bf16.msra.mxu0 %v766
    %830 = vmatprep.subr.bf16.mxu0 %v775
    %831 = vmatpush1.bf16.msra.mxu0 %v774
    %832 = vmatprep.subr.bf16.mxu0 %v783
    %833 = vmatpush1.bf16.msra.mxu0 %v782
    %834 = vmatprep.subr.bf16.mxu0 0
    %835 = vmatpush1.bf16.msra.mxu0 0
    %836 = vmatprep.subr.bf16.mxu0 0
    %837 = vmatpush1.bf16.msra.mxu0 0
    %838 = vmatprep.subr.bf16.mxu0 0
    %839 = vmatpush1.bf16.msra.mxu0 0
    %840 = vmatprep.subr.bf16.mxu0 0
    %841 = vmatpush1.bf16.msra.mxu0 0
    %842 = vmatprep.subr.bf16.mxu0 0
    %843 = vmatpush1.bf16.msra.mxu0 0
    %844 = vmatprep.subr.bf16.mxu0 0
    %845 = vmatpush1.bf16.msra.mxu0 0
    %846 = vmatprep.subr.bf16.mxu0 0
    %847 = vmatpush1.bf16.msra.mxu0 0
    %848 = vmatprep.subr.bf16.mxu0 0
    %849 = vmatpush1.bf16.msra.mxu0 0
    %850 = vmatprep.subr.bf16.mxu0 0
    %851 = vmatpush1.bf16.msra.mxu0 0
    %852 = vmatprep.subr.bf16.mxu0 0
    %853 = vmatpush1.bf16.msra.mxu0 0
    %854 = vmatprep.subr.bf16.mxu0 0
    %855 = vmatpush1.bf16.msra.mxu0 0
    %856 = vmatprep.subr.bf16.mxu0 0
    %857 = vmatpush1.bf16.msra.mxu0 0
    %858 = vmatprep.mubr.bf16.mxu0 0
    %859 = vmatmul.mubr.bf16.gmra.mrb[0].mxu0 %v824
    %v860 = vpop.f32.mrb[0].mxu0
    %v861 = vadd.f32 0.0, %v860
    %v862 = vpop.f32.mrb[0].mxu0
    %v863 = vadd.f32 0.0, %v862
    %v864 = vpop.f32.mrb[0].mxu0
    %v865 = vadd.f32 0.0, %v864
    %v866 = vpop.f32.mrb[0].mxu0
    %v867 = vadd.f32 0.0, %v866
    %868 = vdwg.mxu0
    %869 = vmatprep.subr.bf16.mxu0 %v761
    %870 = vmatpush1.bf16.msra.mxu0 %v760
    %871 = vmatprep.subr.bf16.mxu0 %v769
    %872 = vmatpush1.bf16.msra.mxu0 %v768
    %873 = vmatprep.subr.bf16.mxu0 %v777
    %874 = vmatpush1.bf16.msra.mxu0 %v776
    %875 = vmatprep.subr.bf16.mxu0 %v785
    %876 = vmatpush1.bf16.msra.mxu0 %v784
    %877 = vmatprep.subr.bf16.mxu0 0
    %878 = vmatpush1.bf16.msra.mxu0 0
    %879 = vmatprep.subr.bf16.mxu0 0
    %880 = vmatpush1.bf16.msra.mxu0 0
    %881 = vmatprep.subr.bf16.mxu0 0
    %882 = vmatpush1.bf16.msra.mxu0 0
    %883 = vmatprep.subr.bf16.mxu0 0
    %884 = vmatpush1.bf16.msra.mxu0 0
    %885 = vmatprep.subr.bf16.mxu0 0
    %886 = vmatpush1.bf16.msra.mxu0 0
    %887 = vmatprep.subr.bf16.mxu0 0
    %888 = vmatpush1.bf16.msra.mxu0 0
    %889 = vmatprep.subr.bf16.mxu0 0
    %890 = vmatpush1.bf16.msra.mxu0 0
    %891 = vmatprep.subr.bf16.mxu0 0
    %892 = vmatpush1.bf16.msra.mxu0 0
    %893 = vmatprep.subr.bf16.mxu0 0
    %894 = vmatpush1.bf16.msra.mxu0 0
    %895 = vmatprep.subr.bf16.mxu0 0
    %896 = vmatpush1.bf16.msra.mxu0 0
    %897 = vmatprep.subr.bf16.mxu0 0
    %898 = vmatpush1.bf16.msra.mxu0 0
    %899 = vmatprep.subr.bf16.mxu0 0
    %900 = vmatpush1.bf16.msra.mxu0 0
    %901 = vmatprep.mubr.bf16.mxu0 0
    %902 = vmatmul.mubr.bf16.gmra.mrb[0].mxu0 %v824
    %v903 = vpop.f32.mrb[0].mxu0
    %v904 = vadd.f32 0.0, %v903
    %v905 = vpop.f32.mrb[0].mxu0
    %v906 = vadd.f32 0.0, %v905
    %v907 = vpop.f32.mrb[0].mxu0
    %v908 = vadd.f32 0.0, %v907
    %v909 = vpop.f32.mrb[0].mxu0
    %v910 = vadd.f32 0.0, %v909
    %911 = vdwg.mxu0
    %912 = vmatprep.subr.bf16.mxu0 %v763
    %913 = vmatpush1.bf16.msra.mxu0 %v762
    %914 = vmatprep.subr.bf16.mxu0 %v771
    %915 = vmatpush1.bf16.msra.mxu0 %v770
    %916 = vmatprep.subr.bf16.mxu0 %v779
    %917 = vmatpush1.bf16.msra.mxu0 %v778
    %918 = vmatprep.subr.bf16.mxu0 %v787
    %919 = vmatpush1.bf16.msra.mxu0 %v786
    %920 = vmatprep.subr.bf16.mxu0 0
    %921 = vmatpush1.bf16.msra.mxu0 0
    %922 = vmatprep.subr.bf16.mxu0 0
    %923 = vmatpush1.bf16.msra.mxu0 0
    %924 = vmatprep.subr.bf16.mxu0 0
    %925 = vmatpush1.bf16.msra.mxu0 0
    %926 = vmatprep.subr.bf16.mxu0 0
    %927 = vmatpush1.bf16.msra.mxu0 0
    %928 = vmatprep.subr.bf16.mxu0 0
    %929 = vmatpush1.bf16.msra.mxu0 0
    %930 = vmatprep.subr.bf16.mxu0 0
    %931 = vmatpush1.bf16.msra.mxu0 0
    %932 = vmatprep.subr.bf16.mxu0 0
    %933 = vmatpush1.bf16.msra.mxu0 0
    %934 = vmatprep.subr.bf16.mxu0 0
    %935 = vmatpush1.bf16.msra.mxu0 0
    %936 = vmatprep.subr.bf16.mxu0 0
    %937 = vmatpush1.bf16.msra.mxu0 0
    %938 = vmatprep.subr.bf16.mxu0 0
    %939 = vmatpush1.bf16.msra.mxu0 0
    %940 = vmatprep.subr.bf16.mxu0 0
    %941 = vmatpush1.bf16.msra.mxu0 0
    %942 = vmatprep.subr.bf16.mxu0 0
    %943 = vmatpush1.bf16.msra.mxu0 0
    %944 = vmatprep.mubr.bf16.mxu0 0
    %945 = vmatmul.mubr.bf16.gmra.mrb[0].mxu0 %v824
    %v946 = vpop.f32.mrb[0].mxu0
    %v947 = vadd.f32 0.0, %v946
    %v948 = vpop.f32.mrb[0].mxu0
    %v949 = vadd.f32 0.0, %v948
    %v950 = vpop.f32.mrb[0].mxu0
    %v951 = vadd.f32 0.0, %v950
    %v952 = vpop.f32.mrb[0].mxu0
    %v953 = vadd.f32 0.0, %v952
    %954 = vdwg.mxu0
    %955 = vmatprep.subr.bf16.mxu0 %v765
    %956 = vmatpush1.bf16.msra.mxu0 %v764
    %957 = vmatprep.subr.bf16.mxu0 %v773
    %958 = vmatpush1.bf16.msra.mxu0 %v772
    %959 = vmatprep.subr.bf16.mxu0 %v781
    %960 = vmatpush1.bf16.msra.mxu0 %v780
    %961 = vmatprep.subr.bf16.mxu0 %v789
    %962 = vmatpush1.bf16.msra.mxu0 %v788
    %963 = vmatprep.subr.bf16.mxu0 0
    %964 = vmatpush1.bf16.msra.mxu0 0
    %965 = vmatprep.subr.bf16.mxu0 0
    %966 = vmatpush1.bf16.msra.mxu0 0
    %967 = vmatprep.subr.bf16.mxu0 0
    %968 = vmatpush1.bf16.msra.mxu0 0
    %969 = vmatprep.subr.bf16.mxu0 0
    %970 = vmatpush1.bf16.msra.mxu0 0
    %971 = vmatprep.subr.bf16.mxu0 0
    %972 = vmatpush1.bf16.msra.mxu0 0
    %973 = vmatprep.subr.bf16.mxu0 0
    %974 = vmatpush1.bf16.msra.mxu0 0
    %975 = vmatprep.subr.bf16.mxu0 0
    %976 = vmatpush1.bf16.msra.mxu0 0
    %977 = vmatprep.subr.bf16.mxu0 0
    %978 = vmatpush1.bf16.msra.mxu0 0
    %979 = vmatprep.subr.bf16.mxu0 0
    %980 = vmatpush1.bf16.msra.mxu0 0
    %981 = vmatprep.subr.bf16.mxu0 0
    %982 = vmatpush1.bf16.msra.mxu0 0
    %983 = vmatprep.subr.bf16.mxu0 0
    %984 = vmatpush1.bf16.msra.mxu0 0
    %985 = vmatprep.subr.bf16.mxu0 0
    %986 = vmatpush1.bf16.msra.mxu0 0
    %987 = vmatprep.mubr.bf16.mxu0 0
    %988 = vmatmul.mubr.bf16.gmra.mrb[0].mxu0 %v824
    %v989 = vpop.f32.mrb[0].mxu0
    %v990 = vadd.f32 0.0, %v989
    %v991 = vpop.f32.mrb[0].mxu0
    %v992 = vadd.f32 0.0, %v991
    %v993 = vpop.f32.mrb[0].mxu0
    %v994 = vadd.f32 0.0, %v993
    %v995 = vpop.f32.mrb[0].mxu0
    %v996 = vadd.f32 0.0, %v995
    %997 = vdwg.mxu0
    %998 = vst [vmem:[#allocation5] sm:$0xff] %v861
    %999 = vst [vmem:[#allocation5 + $0x8] sm:$0xff] %v863
    %1000 = vst [vmem:[#allocation5 + $0x10] sm:$0xff] %v904
    %1001 = vst [vmem:[#allocation5 + $0x18] sm:$0xff] %v906
    %1002 = vst [vmem:[#allocation5 + $0x20] sm:$0xff] %v947
    %1003 = vst [vmem:[#allocation5 + $0x28] sm:$0xff] %v949
    %1004 = vst [vmem:[#allocation5 + $0x30] sm:$0xff] %v990
    %1005 = vst [vmem:[#allocation5 + $0x38] sm:$0xff] %v992
    %1006 = vst [vmem:[#allocation5 + $0x40] sm:$0xff] %v865
    %1007 = vst [vmem:[#allocation5 + $0x48] sm:$0xff] %v867
    %1008 = vst [vmem:[#allocation5 + $0x50] sm:$0xff] %v908
    %1009 = vst [vmem:[#allocation5 + $0x58] sm:$0xff] %v910
    %1010 = vst [vmem:[#allocation5 + $0x60] sm:$0xff] %v951
    %1011 = vst [vmem:[#allocation5 + $0x68] sm:$0xff] %v953
    %1012 = vst [vmem:[#allocation5 + $0x70] sm:$0xff] %v994
    %1013 = vst [vmem:[#allocation5 + $0x78] sm:$0xff] %v996
    // Predicated region
    $region26: #{tpu_custom_call.1} parent=1 // pred_check
      _
    $region27: #{tpu_custom_call.1} parent=1 // pred_check_branch
      %1015 = sbr.rel (0) target = $region29
    $region28: #{tpu_custom_call.1} parent=1 // pred_region
      %s1017 = ssub.s32 2048, 2048
      %1018 = vsyncadd [#allocation4], %s1017
      %s1019 = sshll.u32 [#allocation5], 4
      %s1020 = int_to_ptr.vmem [resolvable:$true] %s1019
      %1025 = dma.vmem_to_hbm [thread:$0]  %s1020, 2048, %s5, [#allocation4], 1024, 1024, 64
    $region29: #{tpu_custom_call.1} parent=1 // pred_fallthru
      _
    // Predicated region
    $region30: #{tpu_custom_call.1} parent=1 // pred_check
      _
    $region31: #{tpu_custom_call.1} parent=1 // pred_check_branch
      %1027 = sbr.rel (0) target = $region33
    $region32: #{tpu_custom_call.1} parent=1 // pred_region
      %1028 = dma.done [#allocation4], 2048
    $region33: #{tpu_custom_call.1} parent=1 // pred_fallthru
      _
    %1029 = vsyncpa [#allocation3], 1
    %1030 = vsyncpa [#allocation4], 1

</llo_original>
